<compile_context>
chip_gen: v5e
topology: v5e:2x2
jax: 0.10.0
libtpu: 0.0.40
codegen_flags: <defaults>
</compile_context>

<pallas_src>
import functools

import jax
import jax.numpy as jnp
from jax import lax
from jax.experimental import pallas as pl
from jax.experimental.pallas import tpu as pltpu


# ---------------------------------------------------------------------------
# Kernels (operate on the lane-dense 2D view: x is (B, S*H), pe is (1, S*H))
# ---------------------------------------------------------------------------
def _add_pe_kernel(x_ref, pe_ref, o_ref):
    # x_ref: (TB, TC) tile; pe_ref: (1, TC) tile, resident across batch tiles.
    o_ref[...] = x_ref[...] + pe_ref[...]


def _mix32(h):
    # lowbias32-style integer finalizer; plain uint32 VPU ops, so it lowers on
    # TPU and also runs under the CPU interpreter.
    h = h ^ (h >> jnp.uint32(16))
    h = h * jnp.uint32(0x7FEB352D)
    h = h ^ (h >> jnp.uint32(15))
    h = h * jnp.uint32(0x846CA68B)
    h = h ^ (h >> jnp.uint32(16))
    return h


def _add_pe_dropout_kernel(seed_ref, x_ref, pe_ref, o_ref, *,
                           keep_prob, tile_rows, tile_cols, n_cols):
    summed = x_ref[...] + pe_ref[...]

    # Counter-based RNG: hash(seed, global element index). Deterministic and
    # independent of tiling / grid order.
    c = pl.program_id(0)                         # column-tile index (outer)
    r = pl.program_id(1)                         # row-tile (batch) index (inner)
    row0 = (r * tile_rows).astype(jnp.uint32)
    col0 = (c * tile_cols).astype(jnp.uint32)
    rows = lax.broadcasted_iota(jnp.int32, summed.shape, 0).astype(jnp.uint32) + row0
    cols = lax.broadcasted_iota(jnp.int32, summed.shape, 1).astype(jnp.uint32) + col0
    idx = rows * jnp.uint32(n_cols) + cols
    seed = seed_ref[0].astype(jnp.uint32)
    bits = _mix32(idx ^ (seed * jnp.uint32(0x9E3779B1)))   # uniform uint32

    # keep iff bits < keep_prob * 2^32 (uint32 compare, threshold clamped)
    thresh = min(int(round(keep_prob * 2.0 ** 32)), 2 ** 32 - 1)
    keep = bits < jnp.uint32(thresh)
    scale = jnp.asarray(1.0 / keep_prob, dtype=summed.dtype)
    o_ref[...] = jnp.where(keep, summed * scale, jnp.zeros_like(summed))


# ---------------------------------------------------------------------------
# Tiling heuristic
# ---------------------------------------------------------------------------
def _pick_tiles(n_rows, n_cols, itemsize):
    # Row (batch) tile: multiple of 8 when possible, else the full dim.
    if n_rows >= 8:
        tb = min((n_rows // 8) * 8, 512)
    else:
        tb = n_rows
    # Column tile: lane-dense multiple of 128, sized so one x block stays at
    # ~<= 2 MiB (in + out + pe, double buffered, fits 16/32 MiB scoped VMEM).
    if n_cols <= 128:
        tc = n_cols                              # full dim (allowed)
    else:
        budget = 2 * 1024 * 1024
        max_by_budget = max(128, (budget // (tb * itemsize)) // 128 * 128)
        tc = min(max_by_budget, 4096, (n_cols // 128) * 128)
    return tb, tc


# ---------------------------------------------------------------------------
# Wrapper
# ---------------------------------------------------------------------------
def positional_encoding_learned_1d(
    x: jax.Array,
    embedding_table: jax.Array,
    *,
    dropout_rate: float = 0.1,
    training: bool = False,
    seed: int = 0,
) -> jax.Array:
    """x: (B, S, H); embedding_table: (max_length, H)."""
    B, S, H = x.shape
    max_len, He = embedding_table.shape
    assert He == H and S <= max_len

    # embedding(arange(S)) is a static slice of the table (cheap XLA glue).
    pe = lax.slice_in_dim(embedding_table, 0, S, axis=0).astype(x.dtype)

    # Lane-dense 2D view: merge (S, H) -> N so the last dim is wide.
    N = S * H
    x2 = x.reshape(B, N)
    pe2 = pe.reshape(1, N)

    TB, TC = _pick_tiles(B, N, x.dtype.itemsize)
    grid = (pl.cdiv(N, TC), pl.cdiv(B, TB))      # col tiles outermost -> pe resident

    x_spec = pl.BlockSpec((TB, TC), lambda c, r: (r, c))
    pe_spec = pl.BlockSpec((1, TC), lambda c, r: (0, c))
    out_spec = pl.BlockSpec((TB, TC), lambda c, r: (r, c))
    out_shape = jax.ShapeDtypeStruct((B, N), x.dtype)
    cparams = pltpu.CompilerParams(dimension_semantics=("parallel", "parallel"))

    if (not training) or dropout_rate == 0.0:
        out2 = pl.pallas_call(
            _add_pe_kernel,
            out_shape=out_shape,
            grid=grid,
            in_specs=[x_spec, pe_spec],
            out_specs=out_spec,
            input_output_aliases={0: 0},          # write result over x's buffer
            compiler_params=cparams,
        )(x2, pe2)
    else:
        keep_prob = 1.0 - float(dropout_rate)
        kernel = functools.partial(
            _add_pe_dropout_kernel,
            keep_prob=keep_prob, tile_rows=TB, tile_cols=TC, n_cols=N)
        seed_arr = jnp.asarray([seed], dtype=jnp.int32)
        out2 = pl.pallas_call(
            kernel,
            out_shape=out_shape,
            grid=grid,
            in_specs=[
                pl.BlockSpec(memory_space=pltpu.SMEM),   # seed scalar
                x_spec,
                pe_spec,
            ],
            out_specs=out_spec,
            input_output_aliases={1: 0},          # x2 is operand 1
            compiler_params=cparams,
        )(seed_arr, x2, pe2)

    return out2.reshape(B, S, H)


# ---------------------------------------------------------------------------
# Demo / self-check
# ---------------------------------------------------------------------------
if __name__ == "__main__":
    B, S, H = 2, 8, 32
    MAX_LENGTH = 64
    DROPOUT_RATE = 0.1

    key = jax.random.PRNGKey(0)
    kx, ke = jax.random.split(key)
    x = jax.random.normal(kx, (B, S, H), dtype=jnp.float32)
    # nn.Embedding default init: N(0, 1)
    embedding_table = jax.random.normal(ke, (MAX_LENGTH, H), dtype=jnp.float32)

    ref = x + embedding_table[:S][None, :, :]

    # Eval mode (dropout = identity), matches module.eval() exactly.
    out = positional_encoding_learned_1d(
        x, embedding_table, dropout_rate=DROPOUT_RATE, training=False)
    out = jax.block_until_ready(out)
    assert out.shape == (B, S, H) and out.dtype == x.dtype
    assert jnp.allclose(out, ref, atol=1e-6), "eval-mode mismatch vs reference"

    # Training mode: fused inverted dropout with in-kernel counter-based RNG.
    out_train = positional_encoding_learned_1d(
        x, embedding_table, dropout_rate=DROPOUT_RATE, training=True, seed=123)
    out_train = jax.block_until_ready(out_train)
    assert out_train.shape == (B, S, H)
    kept = out_train != 0.0
    assert jnp.allclose(
        jnp.where(kept, out_train, 0.0),
        jnp.where(kept, ref / (1.0 - DROPOUT_RATE), 0.0),
        atol=1e-5, rtol=1e-5,
    ), "training-mode dropout scaling mismatch"
    drop_frac = float(1.0 - jnp.mean(kept.astype(jnp.float32)))
    assert 0.0 < drop_frac < 0.5, "dropout fraction out of expected range"

    print("KERNEL_OK")
</pallas_src>

<mosaic_0001>
module attributes {stable_mosaic.version = 11 : i64} {
  func.func @_add_pe_kernel(%arg0: i32, %arg1: i32, %arg2: memref<2x256xf32, #tpu.memory_space<vmem>>, %arg3: memref<1x256xf32, #tpu.memory_space<vmem>>, %arg4: memref<2x256xf32, #tpu.memory_space<vmem>>) attributes {dimension_semantics = [#tpu.dimension_semantics<parallel>, #tpu.dimension_semantics<parallel>], iteration_bounds = array<i64: 1, 1>, scalar_prefetch = 0 : i64, scratch_operands = 0 : i64, tpu.core_type = #tpu.core_type<tc>, window_params = [{transform_indices = @transform_0, window_bounds = array<i64: 2, 256>}, {transform_indices = @transform_1, window_bounds = array<i64: 1, 256>}, {transform_indices = @transform_2, window_bounds = array<i64: 2, 256>}]} {
    %c0 = arith.constant 0 : index
    %c0_0 = arith.constant 0 : index
    %0 = vector.load %arg2[%c0, %c0_0] : memref<2x256xf32, #tpu.memory_space<vmem>>, vector<2x256xf32>
    %c0_1 = arith.constant 0 : index
    %c0_2 = arith.constant 0 : index
    %1 = vector.load %arg3[%c0_1, %c0_2] : memref<1x256xf32, #tpu.memory_space<vmem>>, vector<1x256xf32>
    %2 = vector.broadcast %1 : vector<1x256xf32> to vector<2x256xf32>
    %3 = arith.addf %0, %2 : vector<2x256xf32>
    %c0_3 = arith.constant 0 : index
    %c0_4 = arith.constant 0 : index
    %4 = vector.load %arg4[%c0_3, %c0_4] : memref<2x256xf32, #tpu.memory_space<vmem>>, vector<2x256xf32>
    tpu.vector_store %arg4[%c0_3, %c0_4], %3 {strides = array<i32>} : memref<2x256xf32, #tpu.memory_space<vmem>>, vector<2x256xf32>,
    return
  }
  func.func @transform_0(%arg0: i32, %arg1: i32) -> (i32, i32) {
    %c0_i32 = arith.constant 0 : i32
    return %arg1, %arg0 : i32, i32
  }
  func.func @transform_1(%arg0: i32, %arg1: i32) -> (i32, i32) {
    %c0_i32 = arith.constant 0 : i32
    %c0_i32_0 = arith.constant 0 : i32
    return %c0_i32, %arg0 : i32, i32
  }
  func.func @transform_2(%arg0: i32, %arg1: i32) -> (i32, i32) {
    %c0_i32 = arith.constant 0 : i32
    return %arg1, %arg0 : i32, i32
  }
}

</mosaic_0001>

<llo_original>
// kernel: tpu_custom_call.1
$region0: #{tpu_custom_call.1}
  #allocation0 [shape = 'u32[]', space=smem, size = 0x4, offset = 0x4, fixed_abs, tag = 'smem constant byte address 0x4 - core index']
  #allocation1 [shape = 'u32[72,128]{1,0:T(1,128)}', space=vmem, size = 0x9000, scoped, tag = 'internal scratch']
  %s0 = inlined_call_operand.hbm [shape: f32[2,256], index: 0, kind: input, shape index: {}, may-alias: {0,2}]
  %s1 = inlined_call_operand.vmem [shape: f32[1,256], index: 1, kind: input, shape index: {}]
  %s2 = inlined_call_operand.hbm [shape: f32[2,256], index: 2, kind: output, shape index: {}, may-alias: {0,2}]
  %s3 = sld [smem:[#allocation0]]
  $region22: #{tpu_custom_call.1} parent=0
    _
  %s5 = ssub.s32 1, %s3
  %s6 = scalar_select 0, %s5, %s3
  $region1: #{tpu_custom_call.1} parent=0
    #allocation2 [shape = 'u8[2048]{0}', space=vmem, size = 0x800, scoped, tag = 'input window, operand 0, single buffered']
    #allocation3 [shape = 's32[1]{0}', space=sflag, size = 0x4, scoped, tag = 'scoped memory for tpu_custom_call.1']
    #allocation4 [shape = 's32[1]{0}', space=sflag, size = 0x4, scoped, tag = 'scoped memory for tpu_custom_call.1']
    #allocation5 [shape = 'u8[2048]{0}', space=vmem, size = 0x800, scoped, tag = 'output window, operand 0, single buffered']
    %7 = vsyncpa [#allocation3], 0
    %8 = vsyncpa [#allocation4], 0
    // Predicated region
    $region2: #{tpu_custom_call.1} parent=1 // pred_check
      _
    $region3: #{tpu_custom_call.1} parent=1 // pred_check_branch
      %10 = sbr.rel (0) target = $region5
    $region4: #{tpu_custom_call.1} parent=1 // pred_region
      %12 = vsyncadd [#allocation3], 0
      %s14 = sshll.u32 %s0, 4
      %s15 = int_to_ptr.hbm [resolvable:$true] %s14
      %s16 = sshll.u32 [#allocation2], 4
      %s17 = int_to_ptr.vmem [resolvable:$true] %s16
      %19 = dma.hbm_to_vmem [thread:$0]  %s15, 64, %s17, [#allocation3]
    $region5: #{tpu_custom_call.1} parent=1 // pred_fallthru
      _
    // Predicated region
    $region6: #{tpu_custom_call.1} parent=1 // pred_check
      _
    $region7: #{tpu_custom_call.1} parent=1 // pred_check_branch
      %21 = sbr.rel (0) target = $region9
    $region8: #{tpu_custom_call.1} parent=1 // pred_region
      _
    $region9: #{tpu_custom_call.1} parent=1 // pred_fallthru
      _
    // Predicated region
    $region10: #{tpu_custom_call.1} parent=1 // pred_check
      _
    $region11: #{tpu_custom_call.1} parent=1 // pred_check_branch
      %23 = sbr.rel (0) target = $region13
    $region12: #{tpu_custom_call.1} parent=1 // pred_region
      %25 = dma.done [#allocation3], 64
    $region13: #{tpu_custom_call.1} parent=1 // pred_fallthru
      _
    %v26 = vld [vmem:[#allocation2] sm:$0xf]
    %v27 = vld [vmem:[%s1] sm:$0x3]
    %v29 = vperm.slane %v27, 0
    %v30 = vperm.slane %v27, 1
    %v31 = vrot.slane %v30, 6
    %vm32 = vcmask 1041408
    %v33 = vsel %vm32, %v29, %v31
    %v35 = vadd.f32 %v26, %v33
    %36 = vst [vmem:[#allocation5] sm:$0xf] %v35
    // Predicated region
    $region14: #{tpu_custom_call.1} parent=1 // pred_check
      _
    $region15: #{tpu_custom_call.1} parent=1 // pred_check_branch
      %38 = sbr.rel (0) target = $region17
    $region16: #{tpu_custom_call.1} parent=1 // pred_region
      %40 = vsyncadd [#allocation4], 0
      %s42 = sshll.u32 [#allocation5], 4
      %s43 = int_to_ptr.vmem [resolvable:$true] %s42
      %s44 = sshll.u32 %s2, 4
      %s45 = int_to_ptr.hbm [resolvable:$true] %s44
      %47 = dma.vmem_to_hbm [thread:$0]  %s43, 64, %s45, [#allocation4]
    $region17: #{tpu_custom_call.1} parent=1 // pred_fallthru
      _
    // Predicated region
    $region18: #{tpu_custom_call.1} parent=1 // pred_check
      _
    $region19: #{tpu_custom_call.1} parent=1 // pred_check_branch
      %49 = sbr.rel (0) target = $region21
    $region20: #{tpu_custom_call.1} parent=1 // pred_region
      %51 = dma.done [#allocation4], 64
    $region21: #{tpu_custom_call.1} parent=1 // pred_fallthru
      _
    %52 = vsyncpa [#allocation3], 1
    %53 = vsyncpa [#allocation4], 1

</llo_original>
